<compile_context>
chip_gen: v7x
topology: tpu7x:2x2x1
jax: 0.10.0
libtpu: 0.0.40
codegen_flags: <defaults>
</compile_context>

<pallas_src>
import numpy as np
import jax
import jax.numpy as jnp
from jax.experimental import pallas as pl
from jax.experimental.pallas import tpu as pltpu


def _round_up(x, m):
    return ((x + m - 1) // m) * m


def _cdiv(a, b):
    return (a + b - 1) // b


def _contiguous_runs(idx):
    """Decompose a static index list into maximal (start, length) runs."""
    idx = [int(v) for v in np.asarray(idx).reshape(-1)]
    if not idx:                      # guard the degenerate empty-index case
        return []
    runs = []
    start = prev = idx[0]
    for v in idx[1:]:
        if v == prev + 1:
            prev = v
        else:
            runs.append((start, prev - start + 1))
            start = prev = v
    runs.append((start, prev - start + 1))
    return runs


def _make_kernel(runs):
    """Kernel: static lane-slice gather, one lane-dense store per tile."""

    def kernel(x_ref, o_ref):
        # x: [TM, 2*fft_size] f32 (interleaved re/im);  o: [TM, 2*ne] f32
        x = x_ref[...]
        parts = [x[:, s:s + l] for (s, l) in runs]
        o_ref[...] = parts[0] if len(parts) == 1 else jnp.concatenate(parts, axis=-1)

    return kernel


def _pick_tile_rows(R, in_width, out_width):
    """Generation-aware tile height (rows) and VMEM limit."""
    try:
        vmem_cap = pltpu.get_tpu_info().vmem_capacity_bytes
    except Exception:
        vmem_cap = 64 << 20                       # conservative (v7x-like) default

    if vmem_cap >= (100 << 20):                   # v5e / v6e: 128 MiB physical VMEM
        budget = 64 << 20
        vmem_limit = 96 << 20
    else:                                         # v7x: 64 MiB physical VMEM
        budget = 20 << 20
        vmem_limit = 40 << 20

    # Double-buffered input + output blocks, plus ~one tile-width of in-kernel
    # concatenate temporary (not covered by BlockSpec double-buffer accounting).
    bytes_per_row = 4 * (2 * in_width + 2 * out_width + out_width)
    tm = budget // bytes_per_row
    tm = max(8, min(4096, (tm // 8) * 8))
    # Guarantee >= 2 grid steps (costs ~0.35 us) so dimension_semantics
    # ("parallel",) actually shards the row grid across both v7x TensorCores.
    if R > 8:
        tm = min(tm, _round_up(_cdiv(R, 2), 8))
    tm = min(tm, _round_up(R, 8))
    return int(tm), int(vmem_limit)


def remove_nulled_subcarriers(x, sc_ind):
    """x: complex64 [..., fft_size]; sc_ind: static int indices [num_eff]."""
    sc_ind = np.asarray(sc_ind, dtype=np.int32)
    fft_size = int(x.shape[-1])
    lead = tuple(x.shape[:-1])
    R = int(np.prod(lead))
    ne = int(sc_ind.shape[0])
    if ne == 0:
        return jnp.zeros(lead + (0,), jnp.complex64)

    # Interleaved (re, im) representation: element k lives at lanes 2k, 2k+1.
    runs = [(2 * s, 2 * l) for (s, l) in _contiguous_runs(sc_ind)]
    in_width = 2 * fft_size
    out_width = 2 * ne

    # complex64 -> interleaved float32 [R, 2*fft_size].  Prefer a pure dtype
    # reinterpretation; fall back to a single explicit interleave pass when the
    # installed JAX rejects complex in bitcast_convert_type.
    try:
        x2 = jax.lax.bitcast_convert_type(x, jnp.float32)          # [..., fft, 2]
    except (TypeError, NotImplementedError):
        x2 = jnp.stack([jnp.real(x), jnp.imag(x)], axis=-1)        # [..., fft, 2]
    x2 = x2.reshape(R, in_width)

    tm, vmem_limit = _pick_tile_rows(R, in_width, out_width)
    grid = (_cdiv(R, tm),)          # ragged trailing block handled by Pallas masking

    out = pl.pallas_call(
        _make_kernel(runs),
        out_shape=jax.ShapeDtypeStruct((R, out_width), jnp.float32),
        grid_spec=pl.GridSpec(
            grid=grid,
            in_specs=[pl.BlockSpec((tm, in_width), lambda i: (i, 0))],
            out_specs=pl.BlockSpec((tm, out_width), lambda i: (i, 0)),
        ),
        compiler_params=pltpu.CompilerParams(
            dimension_semantics=("parallel",),
            vmem_limit_bytes=vmem_limit,
        ),
        cost_estimate=pl.CostEstimate(
            flops=0,
            transcendentals=0,
            bytes_accessed=int(4 * R * (in_width + out_width)),
        ),
    )(x2)

    # interleaved float32 [R, 2*ne] -> complex64 [..., ne]
    out = out.reshape(lead + (ne, 2))
    try:
        out_c = jax.lax.bitcast_convert_type(out, jnp.complex64)   # [..., ne]
    except (TypeError, NotImplementedError):
        out_c = jax.lax.complex(out[..., 0], out[..., 1])
    return out_c.astype(jnp.complex64)


def _effective_subcarrier_ind(fft_size, num_guard_carriers, dc_null):
    """Deterministic synthetic ResourceGrid.effective_subcarrier_ind."""
    lo, hi = num_guard_carriers
    ind = [k for k in range(lo, fft_size - hi)]
    if dc_null:
        dc = fft_size // 2
        ind = [k for k in ind if k != dc]
    return np.asarray(ind, dtype=np.int32)


if __name__ == "__main__":
    # Small synthetic resource-grid configuration.
    batch_size = 2
    num_tx = 1
    num_streams_per_tx = 1
    num_ofdm_symbols = 14
    fft_size = 64
    num_guard_carriers = (4, 3)
    dc_null = True

    sc_ind = _effective_subcarrier_ind(fft_size, num_guard_carriers, dc_null)

    key = jax.random.PRNGKey(0)
    kr, ki = jax.random.split(key)
    shape = (batch_size, num_tx, num_streams_per_tx, num_ofdm_symbols, fft_size)
    x = (
        jax.random.normal(kr, shape, dtype=jnp.float32)
        + 1j * jax.random.normal(ki, shape, dtype=jnp.float32)
    ).astype(jnp.complex64)

    fn = jax.jit(lambda inp: remove_nulled_subcarriers(inp, sc_ind))
    out = jax.block_until_ready(fn(x))

    # Reference: plain gather along the last axis (same semantics as the
    # PyTorch gather_pytorch(inputs, sc_ind, axis=-1)).
    ref = x[..., jnp.asarray(sc_ind)]
    assert out.shape == shape[:-1] + (sc_ind.shape[0],)
    assert out.dtype == jnp.complex64
    np.testing.assert_allclose(np.asarray(out), np.asarray(ref), rtol=0, atol=0)

    print("KERNEL_OK")
</pallas_src>

<mosaic_0001>
module attributes {stable_mosaic.version = 11 : i64} {
  func.func @kernel(%arg0: i32, %arg1: memref<16x128xf32, #tpu.memory_space<vmem>>, %arg2: memref<16x112xf32, #tpu.memory_space<vmem>>) attributes {dimension_semantics = [#tpu.dimension_semantics<parallel>], iteration_bounds = array<i64: 2>, scalar_prefetch = 0 : i64, scratch_operands = 0 : i64, tpu.core_type = #tpu.core_type<tc>, window_params = [{transform_indices = @transform_0, window_bounds = array<i64: 16, 128>}, {transform_indices = @transform_1, window_bounds = array<i64: 16, 112>}]} {
    %c0 = arith.constant 0 : index
    %c0_0 = arith.constant 0 : index
    %0 = vector.load %arg1[%c0, %c0_0] : memref<16x128xf32, #tpu.memory_space<vmem>>, vector<16x128xf32>
    %1 = vector.extract_strided_slice %0 {offsets = [0, 8], sizes = [16, 56], strides = [1, 1]} : vector<16x128xf32> to vector<16x56xf32>
    %2 = vector.extract_strided_slice %0 {offsets = [0, 66], sizes = [16, 56], strides = [1, 1]} : vector<16x128xf32> to vector<16x56xf32>
    %3 = tpu.concatenate %1, %2 in 1 : vector<16x56xf32>, vector<16x56xf32> -> vector<16x112xf32>
    %c0_1 = arith.constant 0 : index
    %c0_2 = arith.constant 0 : index
    %4 = vector.load %arg2[%c0_1, %c0_2] : memref<16x112xf32, #tpu.memory_space<vmem>>, vector<16x112xf32>
    tpu.vector_store %arg2[%c0_1, %c0_2], %3 {strides = array<i32>} : memref<16x112xf32, #tpu.memory_space<vmem>>, vector<16x112xf32>,
    return
  }
  func.func @transform_0(%arg0: i32) -> (i32, i32) {
    %c0_i32 = arith.constant 0 : i32
    %c0_i32_0 = arith.constant 0 : i32
    return %arg0, %c0_i32 : i32, i32
  }
  func.func @transform_1(%arg0: i32) -> (i32, i32) {
    %c0_i32 = arith.constant 0 : i32
    %c0_i32_0 = arith.constant 0 : i32
    return %arg0, %c0_i32 : i32, i32
  }
}

</mosaic_0001>

<llo_original>
// kernel: custom-call
$region0: #{custom-call}
  %s0 = inlined_call_operand.hbm [shape: c64[2,1,1,14,64], index: 0, kind: input, shape index: {}]
  %s1 = inlined_call_operand.vmem [shape: f32[2,1,1,14,64], index: 1, kind: output, shape index: {}]
  $region1: #{custom-call} parent=0
    #allocation0 [shape = 's32[1]{0}', space=sflag, size = 0x4, scoped, tag = 'scoped memory for custom-call']
    %2 = vsyncpa [#allocation0], 0
    %s3 = sshll.u32 %s1, 4
    %s4 = int_to_ptr.vmem [resolvable:$true] %s3
    %6 = dma.hbm_to_vmem [thread:$0]  %s0, 448, %s4, [#allocation0]
    %7 = dma.done [#allocation0], 448
    %8 = vsyncpa [#allocation0], 1

// kernel: custom-call.1
$region0: #{custom-call.1}
  %s0 = inlined_call_operand.hbm [shape: c64[2,1,1,14,64], index: 0, kind: input, shape index: {}]
  %s1 = inlined_call_operand.vmem [shape: f32[2,1,1,14,64], index: 1, kind: output, shape index: {}]
  %s2 = scalar_lea.hbm %s0, 448
  $region1: #{custom-call.1} parent=0
    #allocation0 [shape = 's32[1]{0}', space=sflag, size = 0x4, scoped, tag = 'scoped memory for custom-call.1']
    %3 = vsyncpa [#allocation0], 0
    %s4 = sshll.u32 %s1, 4
    %s5 = int_to_ptr.vmem [resolvable:$true] %s4
    %7 = dma.hbm_to_vmem [thread:$0]  %s2, 448, %s5, [#allocation0]
    %8 = dma.done [#allocation0], 448
    %9 = vsyncpa [#allocation0], 1

// kernel: custom-call.2
$region0: #{custom-call.2}
  %s0 = inlined_call_operand.vmem [shape: f32[2,1,1,14,56], index: 0, kind: input, shape index: {}]
  %s1 = inlined_call_operand.vmem [shape: f32[2,1,1,14,56], index: 1, kind: input, shape index: {}]
  %s2 = inlined_call_operand.vmem [shape: c64[2,1,1,14,56], index: 2, kind: output, shape index: {}]
  %s4 = scalar_lea.vmem %s2, 112
  %v5 = vld [vmem:[%s0] sm:$0xff]
  %6 = vst [vmem:[%s2] sm:$0xff] %v5
  %s7 = scalar_lea.vmem %s2, 8
  %s8 = scalar_lea.vmem %s0, 8
  %v9 = vld [vmem:[%s8] sm:$0xff]
  %10 = vst [vmem:[%s7] sm:$0xff] %v9
  %s11 = scalar_lea.vmem %s2, 16
  %s12 = scalar_lea.vmem %s0, 16
  %v13 = vld [vmem:[%s12] sm:$0xff]
  %14 = vst [vmem:[%s11] sm:$0xff] %v13
  %s15 = scalar_lea.vmem %s2, 24
  %s16 = scalar_lea.vmem %s0, 24
  %v17 = vld [vmem:[%s16] sm:$0xff]
  %18 = vst [vmem:[%s15] sm:$0xff] %v17
  %s19 = scalar_lea.vmem %s2, 32
  %s20 = scalar_lea.vmem %s0, 32
  %v21 = vld [vmem:[%s20] sm:$0xff]
  %22 = vst [vmem:[%s19] sm:$0xff] %v21
  %s23 = scalar_lea.vmem %s2, 40
  %s24 = scalar_lea.vmem %s0, 40
  %v25 = vld [vmem:[%s24] sm:$0xff]
  %26 = vst [vmem:[%s23] sm:$0xff] %v25
  %s27 = scalar_lea.vmem %s2, 48
  %s28 = scalar_lea.vmem %s0, 48
  %v29 = vld [vmem:[%s28] sm:$0xff]
  %30 = vst [vmem:[%s27] sm:$0xff] %v29
  %s31 = scalar_lea.vmem %s2, 56
  %s32 = scalar_lea.vmem %s0, 56
  %v33 = vld [vmem:[%s32] sm:$0xff]
  %34 = vst [vmem:[%s31] sm:$0xff] %v33
  %s35 = scalar_lea.vmem %s2, 64
  %s36 = scalar_lea.vmem %s0, 64
  %v37 = vld [vmem:[%s36] sm:$0xff]
  %38 = vst [vmem:[%s35] sm:$0xff] %v37
  %s39 = scalar_lea.vmem %s2, 72
  %s40 = scalar_lea.vmem %s0, 72
  %v41 = vld [vmem:[%s40] sm:$0xff]
  %42 = vst [vmem:[%s39] sm:$0xff] %v41
  %s43 = scalar_lea.vmem %s2, 80
  %s44 = scalar_lea.vmem %s0, 80
  %v45 = vld [vmem:[%s44] sm:$0xff]
  %46 = vst [vmem:[%s43] sm:$0xff] %v45
  %s47 = scalar_lea.vmem %s2, 88
  %s48 = scalar_lea.vmem %s0, 88
  %v49 = vld [vmem:[%s48] sm:$0xff]
  %50 = vst [vmem:[%s47] sm:$0xff] %v49
  %s51 = scalar_lea.vmem %s2, 96
  %s52 = scalar_lea.vmem %s0, 96
  %v53 = vld [vmem:[%s52] sm:$0xff]
  %54 = vst [vmem:[%s51] sm:$0xff] %v53
  %s55 = scalar_lea.vmem %s2, 104
  %s56 = scalar_lea.vmem %s0, 104
  %v57 = vld [vmem:[%s56] sm:$0xff]
  %58 = vst [vmem:[%s55] sm:$0xff] %v57
  %v59 = vld [vmem:[%s1] sm:$0xff]
  %60 = vst [vmem:[%s4] sm:$0xff] %v59
  %s61 = scalar_lea.vmem %s4, 8
  %s62 = scalar_lea.vmem %s1, 8
  %v63 = vld [vmem:[%s62] sm:$0xff]
  %64 = vst [vmem:[%s61] sm:$0xff] %v63
  %s65 = scalar_lea.vmem %s4, 16
  %s66 = scalar_lea.vmem %s1, 16
  %v67 = vld [vmem:[%s66] sm:$0xff]
  %68 = vst [vmem:[%s65] sm:$0xff] %v67
  %s69 = scalar_lea.vmem %s4, 24
  %s70 = scalar_lea.vmem %s1, 24
  %v71 = vld [vmem:[%s70] sm:$0xff]
  %72 = vst [vmem:[%s69] sm:$0xff] %v71
  %s73 = scalar_lea.vmem %s4, 32
  %s74 = scalar_lea.vmem %s1, 32
  %v75 = vld [vmem:[%s74] sm:$0xff]
  %76 = vst [vmem:[%s73] sm:$0xff] %v75
  %s77 = scalar_lea.vmem %s4, 40
  %s78 = scalar_lea.vmem %s1, 40
  %v79 = vld [vmem:[%s78] sm:$0xff]
  %80 = vst [vmem:[%s77] sm:$0xff] %v79
  %s81 = scalar_lea.vmem %s4, 48
  %s82 = scalar_lea.vmem %s1, 48
  %v83 = vld [vmem:[%s82] sm:$0xff]
  %84 = vst [vmem:[%s81] sm:$0xff] %v83
  %s85 = scalar_lea.vmem %s4, 56
  %s86 = scalar_lea.vmem %s1, 56
  %v87 = vld [vmem:[%s86] sm:$0xff]
  %88 = vst [vmem:[%s85] sm:$0xff] %v87
  %s89 = scalar_lea.vmem %s4, 64
  %s90 = scalar_lea.vmem %s1, 64
  %v91 = vld [vmem:[%s90] sm:$0xff]
  %92 = vst [vmem:[%s89] sm:$0xff] %v91
  %s93 = scalar_lea.vmem %s4, 72
  %s94 = scalar_lea.vmem %s1, 72
  %v95 = vld [vmem:[%s94] sm:$0xff]
  %96 = vst [vmem:[%s93] sm:$0xff] %v95
  %s97 = scalar_lea.vmem %s4, 80
  %s98 = scalar_lea.vmem %s1, 80
  %v99 = vld [vmem:[%s98] sm:$0xff]
  %100 = vst [vmem:[%s97] sm:$0xff] %v99
  %s101 = scalar_lea.vmem %s4, 88
  %s102 = scalar_lea.vmem %s1, 88
  %v103 = vld [vmem:[%s102] sm:$0xff]
  %104 = vst [vmem:[%s101] sm:$0xff] %v103
  %s105 = scalar_lea.vmem %s4, 96
  %s106 = scalar_lea.vmem %s1, 96
  %v107 = vld [vmem:[%s106] sm:$0xff]
  %108 = vst [vmem:[%s105] sm:$0xff] %v107
  %s109 = scalar_lea.vmem %s4, 104
  %s110 = scalar_lea.vmem %s1, 104
  %v111 = vld [vmem:[%s110] sm:$0xff]
  %112 = vst [vmem:[%s109] sm:$0xff] %v111

// kernel: _lambda_.1
$region0: #{_lambda_.1}
  #allocation0 [shape = 'u32[]', space=smem, size = 0x4, offset = 0x4, fixed_abs, tag = 'smem constant byte address 0x4 - core index']
  #allocation1 [shape = 'u32[144,128]{1,0:T(1,128)}', space=vmem, size = 0x12000, scoped, tag = 'internal scratch']
  %s0 = inlined_call_operand.vmem [shape: f32[28,128], index: 0, kind: input, shape index: {}]
  %s1 = inlined_call_operand.vmem [shape: f32[28,112], index: 1, kind: output, shape index: {}]
  %s2 = sld [smem:[#allocation0]]
  $region37: #{_lambda_.1} parent=0
    _
  %s4 = ssub.s32 1, %s2
  %s5 = scalar_select 0, %s4, %s2
  loop: start=0, step=1, limit=4
  $region2: #{_lambda_.1} parent=0 // loop_pre_header
    _
  $region3: #{_lambda_.1} parent=0 // loop_header
    %s7 = sphi 0, %s11
    %p8 = scmp.ge.s32.totalorder %s7, 4
    %s17 = sphi 0, %s19
    %s20 = sphi 0, %s17
    %s21 = sphi 0, %s20
    %s37 = sphi 0, %s21
    %s43 = sphi 0, %s45
    %s46 = sphi 0, %s43
    %s47 = sphi 0, %s46
    %s63 = sphi 0, %s47
  $region4: #{_lambda_.1} parent=0 // loop_header_branch
    %10 = sbr.rel (%p8) target = $region8
  $region5: #{_lambda_.1} parent=0 // loop_body
    %s12 = ssub.s32 %s7, 1
    %s13 = ssub.s32 %s7, 2
    %s14 = sadd.s32 %s7, 1
    %s15 = ssub.s32 %s7, %s14
    %p16 = scmp.eq.s32.totalorder %s15, 0
    %s18 = sadd.s32 %s17, 1
    %s19 = scalar_select %p16, %s17, %s18
    %p22 = pneg %p16
    %p23 = scmp.eq.s32.totalorder %s7, 1
    %p24 = por %p22, %p23
    %p25 = scmp.ne.s32.totalorder %s17, %s20
    %p26 = scmp.eq.s32.totalorder %s7, 0
    %p27 = por %p25, %p26
    %p28 = scmp.ne.s32.totalorder %s17, %s20
    %p29 = scmp.eq.s32.totalorder %s12, 1
    %p30 = por %p28, %p29
    %p31 = scmp.ne.s32.totalorder %s20, %s21
    %p32 = scmp.eq.s32.totalorder %s12, 0
    %p33 = por %p31, %p32
    %p34 = scmp.ne.s32.totalorder %s20, %s21
    %p35 = scmp.eq.s32.totalorder %s13, 1
    %p36 = por %p34, %p35
    %p38 = scmp.ne.s32.totalorder %s21, %s37
    %p39 = scmp.eq.s32.totalorder %s13, 0
    %p40 = por %p38, %p39
    %s41 = ssub.s32 %s7, %s14
    %p42 = scmp.eq.s32.totalorder %s41, 0
    %s44 = sadd.s32 %s43, 1
    %s45 = scalar_select %p42, %s43, %s44
    %p48 = pneg %p42
    %p49 = scmp.eq.s32.totalorder %s7, 1
    %p50 = por %p48, %p49
    %p51 = scmp.ne.s32.totalorder %s43, %s46
    %p52 = scmp.eq.s32.totalorder %s7, 0
    %p53 = por %p51, %p52
    %p54 = scmp.ne.s32.totalorder %s43, %s46
    %p55 = scmp.eq.s32.totalorder %s12, 1
    %p56 = por %p54, %p55
    %p57 = scmp.ne.s32.totalorder %s46, %s47
    %p58 = scmp.eq.s32.totalorder %s12, 0
    %p59 = por %p57, %p58
    %p60 = scmp.ne.s32.totalorder %s46, %s47
    %p61 = scmp.eq.s32.totalorder %s13, 1
    %p62 = por %p60, %p61
    %p64 = scmp.ne.s32.totalorder %s47, %s63
    %p65 = scmp.eq.s32.totalorder %s13, 0
    %p66 = por %p64, %p65
    %p67 = scmp.le.s32.totalorder 1, %s7
    %p68 = scmp.lt.s32.totalorder %s7, 3
    %p69 = pnand %p67, %p68
    %p70 = pneg %p69
    // Predicated region
    $region9: #{_lambda_.1} parent=5 // pred_check
      _
    $region10: #{_lambda_.1} parent=5 // pred_check_branch
      %72 = sbr.rel (%p69) target = $region12
    $region11: #{_lambda_.1} parent=5 // pred_region
      %s73 = ssub.s32 %s7, 1
    $region12: #{_lambda_.1} parent=5 // pred_fallthru
      _
    %p74 = scmp.lt.s32.totalorder %s7, 2
    // Predicated region
    $region13: #{_lambda_.1} parent=5 // pred_check
      %p75 = pneg %p74
    $region14: #{_lambda_.1} parent=5 // pred_check_branch
      %77 = sbr.rel (%p75) target = $region16
    $region15: #{_lambda_.1} parent=5 // pred_region
      // Predicated region
      $region17: #{_lambda_.1} parent=15 // pred_check
        %p78 = pneg %p27
      $region18: #{_lambda_.1} parent=15 // pred_check_branch
        %80 = sbr.rel (%p78) target = $region20
      $region19: #{_lambda_.1} parent=15 // pred_region
        %s81 = smul.u32 2, %s7
        %p82 = scmp.lt.s32.totalorder %s81, 3
        %s83 = scalar_select %p82, %s81, 3
        %s84 = smul.addr %s83, 8
        %s85 = scalar_lea.vmem %s0, %s84
        %s86 = smul.u32 2, %s7
      $region20: #{_lambda_.1} parent=15 // pred_fallthru
        _
    $region16: #{_lambda_.1} parent=5 // pred_fallthru
      _
    %p87 = scmp.le.s32.totalorder 1, %s7
    %p88 = scmp.lt.s32.totalorder %s7, 3
    %p89 = pnand %p87, %p88
    %p90 = pneg %p89
    // Predicated region
    $region21: #{_lambda_.1} parent=5 // pred_check
      _
    $region22: #{_lambda_.1} parent=5 // pred_check_branch
      %92 = sbr.rel (%p89) target = $region24
    $region23: #{_lambda_.1} parent=5 // pred_region
      %s93 = ssub.s32 %s7, 1
      %s94 = smul.u32 2, %s12
      %p95 = scmp.lt.s32.totalorder %s94, 3
      %s96 = scalar_select %p95, %s94, 3
      %s97 = smul.addr %s96, 8
      %s98 = scalar_lea.vmem %s0, %s97
      %p99 = pneg %p33
      %p100 = pneg %p30
      %p101 = pneg %p59
      %p102 = pneg %p56
      %s103 = smul.u32 2, %s12
      %p104 = scmp.lt.s32.totalorder %s103, 3
      %s105 = scalar_select %p104, %s103, 3
      %s106 = smul.addr %s105, 8
      %s107 = scalar_lea.vmem %s1, %s106
      %s108 = smul.u32 2, %s12
      %p109 = scmp.lt.s32.totalorder %s108, 3
      %s110 = scalar_select %p109, %s108, 3
      %s111 = smul.addr %s110, 8
      %s112 = scalar_lea.vmem %s0, %s111
      %s113 = smul.u32 2, %s12
      %s114 = smul.u32 2, %s12
      %p115 = scmp.lt.s32.totalorder %s114, 3
      %s116 = scalar_select %p115, %s114, 3
      %s117 = smul.addr %s116, 8
      %s118 = scalar_lea.vmem %s1, %s117
      %s119 = smul.u32 2, %s12
      %v120 = vld [vmem:[%s112] sm:$0xff]
      %v121 = vld [vmem:[%s112 + $0x8] sm:$0xff]
      %124 = vrot.lane.b32.xlu0 %v120, 120
      %v125 = vpop.permute.xlu0 %124
      %126 = vrot.lane.b32.xlu0 %v121, 120
      %v127 = vpop.permute.xlu0 %126
      %130 = vrot.lane.b32.xlu0 %v120, 118
      %v131 = vpop.permute.xlu0 %130
      %132 = vrot.lane.b32.xlu0 %v121, 118
      %v133 = vpop.permute.xlu0 %132
      %vm136 = vcmask 457728
      %v137 = vsel %vm136, %v125, %v131
      %v138 = vsel %vm136, %v127, %v133
      %vm139 = vcmask 916480
      %140 = vst.msk [vmem:[%s118] sm:$0xff] %vm139, %v137
      %141 = vst.msk [vmem:[%s118 + $0x8] sm:$0xff] %vm139, %v138
      %s142 = smul.u32 2, %s12
      %p143 = scmp.lt.s32.totalorder %s142, 3
      %s144 = scalar_select %p143, %s142, 3
      %s145 = smul.addr %s144, 8
      %s146 = scalar_lea.vmem %s1, %s145
      // Predicated region
      $region25: #{_lambda_.1} parent=23 // pred_check
        %p147 = pneg %p56
      $region26: #{_lambda_.1} parent=23 // pred_check_branch
        %149 = sbr.rel (%p147) target = $region28
      $region27: #{_lambda_.1} parent=23 // pred_region
        %s150 = smul.u32 2, %s12
      $region28: #{_lambda_.1} parent=23 // pred_fallthru
        _
    $region24: #{_lambda_.1} parent=5 // pred_fallthru
      _
    %p151 = scmp.le.s32.totalorder 2, %s7
    // Predicated region
    $region29: #{_lambda_.1} parent=5 // pred_check
      %p152 = pneg %p151
    $region30: #{_lambda_.1} parent=5 // pred_check_branch
      %154 = sbr.rel (%p152) target = $region32
    $region31: #{_lambda_.1} parent=5 // pred_region
      %s155 = ssub.s32 %s7, 2
      // Predicated region
      $region33: #{_lambda_.1} parent=31 // pred_check
        %p156 = pneg %p62
      $region34: #{_lambda_.1} parent=31 // pred_check_branch
        %158 = sbr.rel (%p156) target = $region36
      $region35: #{_lambda_.1} parent=31 // pred_region
        %s159 = smul.u32 2, %s13
        %p160 = scmp.lt.s32.totalorder %s159, 3
        %s161 = scalar_select %p160, %s159, 3
        %s162 = smul.addr %s161, 8
        %s163 = scalar_lea.vmem %s1, %s162
      $region36: #{_lambda_.1} parent=31 // pred_fallthru
        _
    $region32: #{_lambda_.1} parent=5 // pred_fallthru
      _
  $region6: #{_lambda_.1} parent=0 // loop_footer
    %s11 = sadd.s32 1, %s7
  $region7: #{_lambda_.1} parent=0 // loop_footer_branch
    %6 = sbr.rel target = $region3
  $region8: #{_lambda_.1} parent=0 // loop_exit
    _

</llo_original>
